<compile_context>
chip_gen: v7x
topology: tpu7x:2x2x1
jax: 0.10.0
libtpu: 0.0.40
codegen_flags: <defaults>
</compile_context>

<pallas_src>
import functools

import jax
import jax.numpy as jnp
from jax.experimental import pallas as pl
from jax.experimental.pallas import tpu as pltpu

LANE = 128  # vreg lane width


def _round_up(x, m):
    return (x + m - 1) // m * m


def _pick_tm(m):
    """Row-tile heuristic: sublane-legal, <=2048 rows, even #grid-steps when possible."""
    if m <= 512:
        # Tiny workload: two 16-sublane-aligned blocks if that actually splits the
        # work (v7x has 2 TCs), otherwise one full block (block dim == array dim
        # is always legal, even if m is not a multiple of 8).
        half = _round_up((m + 1) // 2, 16)
        return half if half < m else m
    # Large workload: 256-row-aligned tiles capped at 2048, targeting an even
    # number of grid steps so both v7x TensorCores stay balanced.
    steps = max(2, 2 * ((m + 4096 - 1) // 4096))
    tm = _round_up((m + steps - 1) // steps, 256)
    return min(tm, 2048)


def _ffn_kernel(x_ref, w1_ref, b1_ref, w2_ref, b2_ref, o_ref, xpad_ref, *, d):
    """One row-tile: y = relu(x @ W1 + b1) @ W2 + b2 (dropout == identity, eval)."""
    dp = xpad_ref.shape[-1]
    cdt = xpad_ref.dtype

    # Cast (VPU) + lane-pad the activation tile to Dp inside VMEM so the MXU feed
    # is full-width (K = Dp).  The pad tail is re-zeroed every step: with a
    # "parallel" grid each TensorCore owns its own scratch and stale VMEM could
    # contain NaN (NaN * 0 != 0 would poison the row).
    xpad_ref[:, :d] = x_ref[...].astype(cdt)
    if dp > d:
        xpad_ref[:, d:] = jnp.zeros((xpad_ref.shape[0], dp - d), cdt)

    h = jnp.dot(xpad_ref[...], w1_ref[...], preferred_element_type=jnp.float32)
    h = jnp.maximum(h + b1_ref[...], 0.0)          # bias + ReLU on the f32 accumulator
    y = jnp.dot(h.astype(cdt), w2_ref[...], preferred_element_type=jnp.float32)
    y = y + b2_ref[...]
    if dp > d:
        y = y[:, :d]
    o_ref[...] = y.astype(o_ref.dtype)


def prepare_ffn_params(w1, b1, w2, b2, compute_dtype=jnp.bfloat16):
    """One-time parameter prep: pad weights to (Dp, Dp) in compute dtype, biases to
    (1, Dp) f32.  Weights are (in_features, out_features) == PyTorch weight.T."""
    d = w1.shape[0]
    dp = _round_up(d, LANE)
    cdt = compute_dtype
    w1p = jnp.zeros((dp, dp), cdt).at[:d, :d].set(w1.astype(cdt))
    w2p = jnp.zeros((dp, dp), cdt).at[:d, :d].set(w2.astype(cdt))
    b1p = jnp.zeros((1, dp), jnp.float32).at[:, :d].set(
        jnp.reshape(b1, (1, d)).astype(jnp.float32))
    b2p = jnp.zeros((1, dp), jnp.float32).at[:, :d].set(
        jnp.reshape(b2, (1, d)).astype(jnp.float32))
    return w1p, b1p, w2p, b2p


@functools.partial(jax.jit, static_argnames=("tm", "out_dtype"))
def ffn_forward(x, w1p, b1p, w2p, b2p, *, tm=None, out_dtype=None):
    """x: (..., D) unpadded.  w1p/b1p/w2p/b2p from prepare_ffn_params. Returns (..., D)."""
    orig_shape = x.shape
    d = orig_shape[-1]
    dp = w1p.shape[0]
    out_dt = x.dtype if out_dtype is None else jnp.dtype(out_dtype)

    x2 = x.reshape(-1, d)
    m = x2.shape[0]

    if tm is None:
        tm = _pick_tm(m)
    if tm != m and tm % 8 != 0:
        raise ValueError(f"tm={tm} must be a multiple of 8 (sublane tiling) or equal M={m}")
    grid_m = pl.cdiv(m, tm)

    xbytes = jnp.dtype(x.dtype).itemsize
    obytes = jnp.dtype(out_dt).itemsize
    cbytes = jnp.dtype(w1p.dtype).itemsize

    # VMEM budget: double-buffered x/out tiles + padded-x scratch + resident weights.
    vmem_est = (2 * tm * d * xbytes          # x tiles (double-buffered)
                + 2 * tm * d * obytes        # out tiles (double-buffered)
                + tm * dp * cbytes           # lane-padded x scratch
                + 2 * dp * dp * cbytes       # W1 + W2 (single-buffered)
                + 2 * dp * 4)                # biases
    vmem_limit = int(min(max(2 * vmem_est, 16 << 20), 40 << 20))

    cost = pl.CostEstimate(
        flops=4 * m * dp * dp,
        transcendentals=0,
        bytes_accessed=m * d * (xbytes + obytes) + 2 * dp * dp * cbytes + 2 * dp * 4,
    )

    # Constant-index-map operands: single-buffer to avoid wasting VMEM.
    weight_spec = pl.BlockSpec((dp, dp), lambda i: (0, 0), pipeline_mode=pl.Buffered(1))
    bias_spec = pl.BlockSpec((1, dp), lambda i: (0, 0), pipeline_mode=pl.Buffered(1))

    out = pl.pallas_call(
        functools.partial(_ffn_kernel, d=d),
        out_shape=jax.ShapeDtypeStruct((m, d), out_dt),
        grid_spec=pltpu.PrefetchScalarGridSpec(
            num_scalar_prefetch=0,
            grid=(grid_m,),
            in_specs=[
                pl.BlockSpec((tm, d), lambda i: (i, 0)),   # x rows (unpadded in HBM)
                weight_spec,                               # W1 (Dp, Dp)
                bias_spec,                                 # b1 (1, Dp)
                weight_spec,                               # W2 (Dp, Dp)
                bias_spec,                                 # b2 (1, Dp)
            ],
            out_specs=pl.BlockSpec((tm, d), lambda i: (i, 0)),
            scratch_shapes=[pltpu.VMEM((tm, dp), w1p.dtype)],
        ),
        compiler_params=pltpu.CompilerParams(
            dimension_semantics=("parallel",),
            vmem_limit_bytes=vmem_limit,
        ),
        cost_estimate=cost,
    )(x2, w1p, b1p, w2p, b2p)

    return out.reshape(orig_shape).astype(out_dt)


def init_ffn_params(key, state_size, dtype=jnp.float32):
    """Deterministic init mirroring nn.Linear default: U(-1/sqrt(fan_in), 1/sqrt(fan_in))."""
    k1, k2, k3, k4 = jax.random.split(key, 4)
    bound = 1.0 / jnp.sqrt(state_size)
    # stored as (in_features, out_features) == PyTorch weight.T
    w1 = jax.random.uniform(k1, (state_size, state_size), dtype, -bound, bound)
    b1 = jax.random.uniform(k2, (1, state_size), dtype, -bound, bound)
    w2 = jax.random.uniform(k3, (state_size, state_size), dtype, -bound, bound)
    b2 = jax.random.uniform(k4, (1, state_size), dtype, -bound, bound)
    return w1, b1, w2, b2


if __name__ == "__main__":
    key = jax.random.PRNGKey(0)
    kx, kp = jax.random.split(key)

    # Module default state_size=200 (exercises the in-kernel 200 -> 256 lane pad).
    batch, seq, state_size = 2, 8, 200
    x = jax.random.normal(kx, (batch, seq, state_size), jnp.float32)
    w1, b1, w2, b2 = init_ffn_params(kp, state_size)

    # One-time parameter prep (hoisted out of the forward call).
    w1p, b1p, w2p, b2p = prepare_ffn_params(w1, b1, w2, b2)
    w1p, b1p, w2p, b2p = jax.block_until_ready((w1p, b1p, w2p, b2p))

    out = jax.block_until_ready(ffn_forward(x, w1p, b1p, w2p, b2p))
    assert out.shape == x.shape and out.dtype == x.dtype

    # f32 reference (kernel uses bf16 matmul inputs with f32 accumulation).
    ref = jnp.maximum(x @ w1 + b1, 0.0) @ w2 + b2
    assert jnp.allclose(out, ref, atol=5e-2, rtol=5e-2), "mismatch vs reference"

    # Larger case: M = 1200 rows -> 2-step grid with tm=768 and a ragged final
    # block (rows 1200..1535 masked on write).
    x2 = jax.random.normal(jax.random.PRNGKey(1), (3, 400, state_size), jnp.float32)
    out2 = jax.block_until_ready(ffn_forward(x2, w1p, b1p, w2p, b2p))
    ref2 = jnp.maximum(x2 @ w1 + b1, 0.0) @ w2 + b2
    assert out2.shape == x2.shape
    assert jnp.allclose(out2, ref2, atol=5e-2, rtol=5e-2), "mismatch vs reference (tiled)"

    print("KERNEL_OK")
</pallas_src>

<mosaic_0001>
module attributes {stable_mosaic.version = 11 : i64} {
  func.func @_ffn_kernel(%arg0: i32, %arg1: memref<16x200xf32, #tpu.memory_space<vmem>>, %arg2: memref<256x256xbf16, #tpu.memory_space<vmem>>, %arg3: memref<1x256xf32, #tpu.memory_space<vmem>>, %arg4: memref<256x256xbf16, #tpu.memory_space<vmem>>, %arg5: memref<1x256xf32, #tpu.memory_space<vmem>>, %arg6: memref<16x200xf32, #tpu.memory_space<vmem>>, %arg7: memref<16x256xbf16, #tpu.memory_space<vmem>>) attributes {dimension_semantics = [#tpu.dimension_semantics<parallel>], iteration_bounds = array<i64: 1>, scalar_prefetch = 0 : i64, scratch_operands = 1 : i64, tpu.core_type = #tpu.core_type<tc>, window_params = [{transform_indices = @transform_0, window_bounds = array<i64: 16, 200>}, {pipeline_mode = #tpu.pipeline_mode<synchronous>, transform_indices = @transform_1, window_bounds = array<i64: 256, 256>}, {pipeline_mode = #tpu.pipeline_mode<synchronous>, transform_indices = @transform_2, window_bounds = array<i64: 1, 256>}, {pipeline_mode = #tpu.pipeline_mode<synchronous>, transform_indices = @transform_3, window_bounds = array<i64: 256, 256>}, {pipeline_mode = #tpu.pipeline_mode<synchronous>, transform_indices = @transform_4, window_bounds = array<i64: 1, 256>}, {transform_indices = @transform_5, window_bounds = array<i64: 16, 200>}]} {
    %c0 = arith.constant 0 : index
    %c0_0 = arith.constant 0 : index
    %0 = vector.load %arg1[%c0, %c0_0] : memref<16x200xf32, #tpu.memory_space<vmem>>, vector<16x200xf32>
    %1 = arith.truncf %0 : vector<16x200xf32> to vector<16x200xbf16>
    %c0_1 = arith.constant 0 : index
    %c0_2 = arith.constant 0 : index
    %2 = vector.load %arg7[%c0_1, %c0_2] : memref<16x256xbf16, #tpu.memory_space<vmem>>, vector<16x200xbf16>
    tpu.vector_store %arg7[%c0_1, %c0_2], %1 {strides = array<i32>} : memref<16x256xbf16, #tpu.memory_space<vmem>>, vector<16x200xbf16>,
    %cst = arith.constant 0.000000e+00 : bf16
    %3 = vector.broadcast %cst : bf16 to vector<16x56xbf16>
    %c0_3 = arith.constant 0 : index
    %c200 = arith.constant 200 : index
    %4 = vector.load %arg7[%c0_3, %c200] : memref<16x256xbf16, #tpu.memory_space<vmem>>, vector<16x56xbf16>
    tpu.vector_store %arg7[%c0_3, %c200], %3 {strides = array<i32>} : memref<16x256xbf16, #tpu.memory_space<vmem>>, vector<16x56xbf16>,
    %c0_4 = arith.constant 0 : index
    %c0_5 = arith.constant 0 : index
    %5 = vector.load %arg7[%c0_4, %c0_5] : memref<16x256xbf16, #tpu.memory_space<vmem>>, vector<16x256xbf16>
    %c0_6 = arith.constant 0 : index
    %c0_7 = arith.constant 0 : index
    %6 = vector.load %arg2[%c0_6, %c0_7] : memref<256x256xbf16, #tpu.memory_space<vmem>>, vector<256x256xbf16>
    %cst_8 = arith.constant dense<0.000000e+00> : vector<16x256xf32>
    %7 = tpu.matmul %5, %6, %cst_8 {dimension_numbers = #tpu.dot_dimension_numbers<[1], [0], [0], [1], [0, 0, 1, 1], [], []>} : vector<16x256xbf16>, vector<256x256xbf16>, vector<16x256xf32> -> vector<16x256xf32>
    %c0_9 = arith.constant 0 : index
    %c0_10 = arith.constant 0 : index
    %8 = vector.load %arg3[%c0_9, %c0_10] : memref<1x256xf32, #tpu.memory_space<vmem>>, vector<1x256xf32>
    %9 = vector.broadcast %8 : vector<1x256xf32> to vector<16x256xf32>
    %10 = arith.addf %7, %9 : vector<16x256xf32>
    %cst_11 = arith.constant 0.000000e+00 : f32
    %11 = vector.broadcast %cst_11 : f32 to vector<16x256xf32>
    %12 = arith.maximumf %10, %11 : vector<16x256xf32>
    %13 = arith.truncf %12 : vector<16x256xf32> to vector<16x256xbf16>
    %c0_12 = arith.constant 0 : index
    %c0_13 = arith.constant 0 : index
    %14 = vector.load %arg4[%c0_12, %c0_13] : memref<256x256xbf16, #tpu.memory_space<vmem>>, vector<256x256xbf16>
    %cst_14 = arith.constant dense<0.000000e+00> : vector<16x256xf32>
    %15 = tpu.matmul %13, %14, %cst_14 {dimension_numbers = #tpu.dot_dimension_numbers<[1], [0], [0], [1], [0, 0, 1, 1], [], []>} : vector<16x256xbf16>, vector<256x256xbf16>, vector<16x256xf32> -> vector<16x256xf32>
    %c0_15 = arith.constant 0 : index
    %c0_16 = arith.constant 0 : index
    %16 = vector.load %arg5[%c0_15, %c0_16] : memref<1x256xf32, #tpu.memory_space<vmem>>, vector<1x256xf32>
    %17 = vector.broadcast %16 : vector<1x256xf32> to vector<16x256xf32>
    %18 = arith.addf %15, %17 : vector<16x256xf32>
    %19 = vector.extract_strided_slice %18 {offsets = [0, 0], sizes = [16, 200], strides = [1, 1]} : vector<16x256xf32> to vector<16x200xf32>
    %c0_17 = arith.constant 0 : index
    %c0_18 = arith.constant 0 : index
    %20 = vector.load %arg6[%c0_17, %c0_18] : memref<16x200xf32, #tpu.memory_space<vmem>>, vector<16x200xf32>
    tpu.vector_store %arg6[%c0_17, %c0_18], %19 {strides = array<i32>} : memref<16x200xf32, #tpu.memory_space<vmem>>, vector<16x200xf32>,
    return
  }
  func.func @transform_0(%arg0: i32) -> (i32, i32) {
    %c0_i32 = arith.constant 0 : i32
    %c0_i32_0 = arith.constant 0 : i32
    return %arg0, %c0_i32 : i32, i32
  }
  func.func @transform_1(%arg0: i32) -> (i32, i32) {
    %c0_i32 = arith.constant 0 : i32
    %c0_i32_0 = arith.constant 0 : i32
    %c0_i32_1 = arith.constant 0 : i32
    return %c0_i32, %c0_i32_0 : i32, i32
  }
  func.func @transform_2(%arg0: i32) -> (i32, i32) {
    %c0_i32 = arith.constant 0 : i32
    %c0_i32_0 = arith.constant 0 : i32
    %c0_i32_1 = arith.constant 0 : i32
    return %c0_i32, %c0_i32_0 : i32, i32
  }
  func.func @transform_3(%arg0: i32) -> (i32, i32) {
    %c0_i32 = arith.constant 0 : i32
    %c0_i32_0 = arith.constant 0 : i32
    %c0_i32_1 = arith.constant 0 : i32
    return %c0_i32, %c0_i32_0 : i32, i32
  }
  func.func @transform_4(%arg0: i32) -> (i32, i32) {
    %c0_i32 = arith.constant 0 : i32
    %c0_i32_0 = arith.constant 0 : i32
    %c0_i32_1 = arith.constant 0 : i32
    return %c0_i32, %c0_i32_0 : i32, i32
  }
  func.func @transform_5(%arg0: i32) -> (i32, i32) {
    %c0_i32 = arith.constant 0 : i32
    %c0_i32_0 = arith.constant 0 : i32
    return %arg0, %c0_i32 : i32, i32
  }
}

</mosaic_0001>

<llo_original>
// kernel: ffn_forward.1
$region0: #{ffn_forward.1}
  #allocation0 [shape = 'u32[]', space=smem, size = 0x4, offset = 0x4, fixed_abs, tag = 'smem constant byte address 0x4 - core index']
  #allocation1 [shape = 'u32[144,128]{1,0:T(1,128)}', space=vmem, size = 0x12000, scoped, tag = 'internal scratch']
  #allocation2 [shape = 'bf16[16,256]{1,0:T(16,128)(2,1)}', space=vmem, size = 0x2000, scoped, tag = 'scratch operand']
  %s0 = inlined_call_operand.hbm [shape: f32[16,200], index: 0, kind: input, shape index: {}]
  %s1 = inlined_call_operand.hbm [shape: bf16[256,256], index: 1, kind: input, shape index: {}]
  %s2 = inlined_call_operand.vmem [shape: f32[1,256], index: 2, kind: input, shape index: {}]
  %s3 = inlined_call_operand.hbm [shape: bf16[256,256], index: 3, kind: input, shape index: {}]
  %s4 = inlined_call_operand.vmem [shape: f32[1,256], index: 4, kind: input, shape index: {}]
  %s5 = inlined_call_operand.hbm [shape: f32[16,200], index: 5, kind: output, shape index: {}]
  %s6 = sld [smem:[#allocation0]]
  $region42: #{ffn_forward.1} parent=0
    _
  %s8 = ssub.s32 1, %s6
  %s9 = scalar_select 0, %s8, %s6
  $region1: #{ffn_forward.1} parent=0
    #allocation3 [shape = 'u8[16384]{0}', space=vmem, size = 0x4000, scoped, tag = 'input window, operand 0, single buffered']
    #allocation4 [shape = 's32[1]{0}', space=sflag, size = 0x4, scoped, tag = 'scoped memory for ffn_forward.1']
    #allocation5 [shape = 's32[1]{0}', space=sflag, size = 0x4, scoped, tag = 'scoped memory for ffn_forward.1']
    #allocation6 [shape = 'u8[131072]{0}', space=vmem, size = 0x20000, scoped, tag = 'input window, operand 1, single buffered']
    #allocation7 [shape = 's32[1]{0}', space=sflag, size = 0x4, scoped, tag = 'scoped memory for ffn_forward.1']
    #allocation8 [shape = 'u8[131072]{0}', space=vmem, size = 0x20000, scoped, tag = 'input window, operand 3, single buffered']
    #allocation9 [shape = 'u8[16384]{0}', space=vmem, size = 0x4000, scoped, tag = 'output window, operand 0, single buffered']
    %10 = vsyncpa [#allocation4], 0
    %11 = vsyncpa [#allocation7], 0
    %12 = vsyncpa [#allocation5], 0
    // Predicated region
    $region2: #{ffn_forward.1} parent=1 // pred_check
      _
    $region3: #{ffn_forward.1} parent=1 // pred_check_branch
      %14 = sbr.rel (0) target = $region5
    $region4: #{ffn_forward.1} parent=1 // pred_region
      %s16 = ssub.s32 512, 512
      %17 = vsyncadd [#allocation4], %s16
      %s18 = sshll.u32 [#allocation3], 4
      %s19 = int_to_ptr.vmem [resolvable:$true] %s18
      %24 = dma.hbm_to_vmem [thread:$0]  %s0, 512, %s19, [#allocation4], 256, 256, 16
    $region5: #{ffn_forward.1} parent=1 // pred_fallthru
      _
    // Predicated region
    $region6: #{ffn_forward.1} parent=1 // pred_check
      _
    $region7: #{ffn_forward.1} parent=1 // pred_check_branch
      %26 = sbr.rel (0) target = $region9
    $region8: #{ffn_forward.1} parent=1 // pred_region
      %s28 = ssub.s32 4096, 4096
      %29 = vsyncadd [#allocation7], %s28
      %s30 = sshll.u32 [#allocation6], 4
      %s31 = int_to_ptr.vmem [resolvable:$true] %s30
      %36 = dma.hbm_to_vmem [thread:$0]  %s1, 4096, %s31, [#allocation7], 128, 128, 8
    $region9: #{ffn_forward.1} parent=1 // pred_fallthru
      _
    // Predicated region
    $region10: #{ffn_forward.1} parent=1 // pred_check
      _
    $region11: #{ffn_forward.1} parent=1 // pred_check_branch
      %38 = sbr.rel (0) target = $region13
    $region12: #{ffn_forward.1} parent=1 // pred_region
      _
    $region13: #{ffn_forward.1} parent=1 // pred_fallthru
      _
    // Predicated region
    $region14: #{ffn_forward.1} parent=1 // pred_check
      _
    $region15: #{ffn_forward.1} parent=1 // pred_check_branch
      %40 = sbr.rel (0) target = $region17
    $region16: #{ffn_forward.1} parent=1 // pred_region
      %s42 = ssub.s32 4096, 4096
      %43 = vsyncadd [#allocation7], %s42
      %s44 = sshll.u32 [#allocation8], 4
      %s45 = int_to_ptr.vmem [resolvable:$true] %s44
      %50 = dma.hbm_to_vmem [thread:$0]  %s3, 4096, %s45, [#allocation7], 128, 128, 8
    $region17: #{ffn_forward.1} parent=1 // pred_fallthru
      _
    // Predicated region
    $region18: #{ffn_forward.1} parent=1 // pred_check
      _
    $region19: #{ffn_forward.1} parent=1 // pred_check_branch
      %52 = sbr.rel (0) target = $region21
    $region20: #{ffn_forward.1} parent=1 // pred_region
      _
    $region21: #{ffn_forward.1} parent=1 // pred_fallthru
      _
    // Predicated region
    $region22: #{ffn_forward.1} parent=1 // pred_check
      _
    $region23: #{ffn_forward.1} parent=1 // pred_check_branch
      %54 = sbr.rel (0) target = $region25
    $region24: #{ffn_forward.1} parent=1 // pred_region
      %55 = dma.done [#allocation4], 512
    $region25: #{ffn_forward.1} parent=1 // pred_fallthru
      _
    // Predicated region
    $region26: #{ffn_forward.1} parent=1 // pred_check
      _
    $region27: #{ffn_forward.1} parent=1 // pred_check_branch
      %57 = sbr.rel (0) target = $region29
    $region28: #{ffn_forward.1} parent=1 // pred_region
      %58 = dma.done [#allocation7], 4096
    $region29: #{ffn_forward.1} parent=1 // pred_fallthru
      _
    // Predicated region
    $region30: #{ffn_forward.1} parent=1 // pred_check
      _
    $region31: #{ffn_forward.1} parent=1 // pred_check_branch
      %60 = sbr.rel (0) target = $region33
    $region32: #{ffn_forward.1} parent=1 // pred_region
      %61 = dma.done [#allocation7], 4096
    $region33: #{ffn_forward.1} parent=1 // pred_fallthru
      _
    %v63 = vld [vmem:[#allocation3] sm:$0xff]
    %v64 = vld [vmem:[#allocation3 + $0x8] sm:$0xff]
    %v65 = vld [vmem:[#allocation3 + $0x10] sm:$0xff]
    %v66 = vld [vmem:[#allocation3 + $0x18] sm:$0xff]
    %v67 = vpack.c.bf16 %v65, %v63
    %v68 = vpack.c.bf16 %v66, %v64
    %69 = vst [vmem:[#allocation2] sm:$0xff] %v67
    %vm70 = vcmask 588800
    %71 = vst.msk [vmem:[#allocation2 + $0x8] sm:$0xff] %vm70, %v68
    %vm72 = vcmask 1048128
    %73 = vst.msk [vmem:[#allocation2 + $0x8] sm:$0xff] %vm72, 0
    %v74 = vld [vmem:[#allocation2] sm:$0xff]
    %v75 = vld [vmem:[#allocation2 + $0x8] sm:$0xff]
    %v76 = vld [vmem:[#allocation6] sm:$0xff]
    %v77 = vld [vmem:[#allocation6 + $0x8] sm:$0xff]
    %v78 = vld [vmem:[#allocation6 + $0x10] sm:$0xff]
    %v79 = vld [vmem:[#allocation6 + $0x18] sm:$0xff]
    %v80 = vld [vmem:[#allocation6 + $0x20] sm:$0xff]
    %v81 = vld [vmem:[#allocation6 + $0x28] sm:$0xff]
    %v82 = vld [vmem:[#allocation6 + $0x30] sm:$0xff]
    %v83 = vld [vmem:[#allocation6 + $0x38] sm:$0xff]
    %v84 = vld [vmem:[#allocation6 + $0x40] sm:$0xff]
    %v85 = vld [vmem:[#allocation6 + $0x48] sm:$0xff]
    %v86 = vld [vmem:[#allocation6 + $0x50] sm:$0xff]
    %v87 = vld [vmem:[#allocation6 + $0x58] sm:$0xff]
    %v88 = vld [vmem:[#allocation6 + $0x60] sm:$0xff]
    %v89 = vld [vmem:[#allocation6 + $0x68] sm:$0xff]
    %v90 = vld [vmem:[#allocation6 + $0x70] sm:$0xff]
    %v91 = vld [vmem:[#allocation6 + $0x78] sm:$0xff]
    %v92 = vld [vmem:[#allocation6 + $0x80] sm:$0xff]
    %v93 = vld [vmem:[#allocation6 + $0x88] sm:$0xff]
    %v94 = vld [vmem:[#allocation6 + $0x90] sm:$0xff]
    %v95 = vld [vmem:[#allocation6 + $0x98] sm:$0xff]
    %v96 = vld [vmem:[#allocation6 + $0xa0] sm:$0xff]
    %v97 = vld [vmem:[#allocation6 + $0xa8] sm:$0xff]
    %v98 = vld [vmem:[#allocation6 + $0xb0] sm:$0xff]
    %v99 = vld [vmem:[#allocation6 + $0xb8] sm:$0xff]
    %v100 = vld [vmem:[#allocation6 + $0xc0] sm:$0xff]
    %v101 = vld [vmem:[#allocation6 + $0xc8] sm:$0xff]
    %v102 = vld [vmem:[#allocation6 + $0xd0] sm:$0xff]
    %v103 = vld [vmem:[#allocation6 + $0xd8] sm:$0xff]
    %v104 = vld [vmem:[#allocation6 + $0xe0] sm:$0xff]
    %v105 = vld [vmem:[#allocation6 + $0xe8] sm:$0xff]
    %v106 = vld [vmem:[#allocation6 + $0xf0] sm:$0xff]
    %v107 = vld [vmem:[#allocation6 + $0xf8] sm:$0xff]
    %v108 = vld [vmem:[%s2] sm:$0x3]
    %v110 = vlaneseq
    %v111 = vshrl.u32 %v110, 7
    %v112 = vsub.s32 0, %v111
    %v113 = vrot.slane %v108, %v112
    %v114 = vlaneseq
    %v115 = vshrl.u32 %v114, 7
    %v116 = vsub.s32 1, %v115
    %v117 = vrot.slane %v108, %v116
    %v152 = vunpack.c.l.b16 %v76
    %v153 = vunpack.c.h.b16 %v76
    %v154 = vunpack.c.l.b16 %v77
    %v155 = vunpack.c.h.b16 %v77
    %v156 = vunpack.c.l.b16 %v78
    %v157 = vunpack.c.h.b16 %v78
    %v158 = vunpack.c.l.b16 %v79
    %v159 = vunpack.c.h.b16 %v79
    %v160 = vunpack.c.l.b16 %v80
    %v161 = vunpack.c.h.b16 %v80
    %v162 = vunpack.c.l.b16 %v81
    %v163 = vunpack.c.h.b16 %v81
    %v164 = vunpack.c.l.b16 %v82
    %v165 = vunpack.c.h.b16 %v82
    %v166 = vunpack.c.l.b16 %v83
    %v167 = vunpack.c.h.b16 %v83
    %v168 = vunpack.c.l.b16 %v84
    %v169 = vunpack.c.h.b16 %v84
    %v170 = vunpack.c.l.b16 %v85
    %v171 = vunpack.c.h.b16 %v85
    %v172 = vunpack.c.l.b16 %v86
    %v173 = vunpack.c.h.b16 %v86
    %v174 = vunpack.c.l.b16 %v87
    %v175 = vunpack.c.h.b16 %v87
    %v176 = vunpack.c.l.b16 %v88
    %v177 = vunpack.c.h.b16 %v88
    %v178 = vunpack.c.l.b16 %v89
    %v179 = vunpack.c.h.b16 %v89
    %v180 = vunpack.c.l.b16 %v90
    %v181 = vunpack.c.h.b16 %v90
    %v182 = vunpack.c.l.b16 %v91
    %v183 = vunpack.c.h.b16 %v91
    %v184 = vunpack.c.l.b16 %v92
    %v185 = vunpack.c.h.b16 %v92
    %v186 = vunpack.c.l.b16 %v93
    %v187 = vunpack.c.h.b16 %v93
    %v188 = vunpack.c.l.b16 %v94
    %v189 = vunpack.c.h.b16 %v94
    %v190 = vunpack.c.l.b16 %v95
    %v191 = vunpack.c.h.b16 %v95
    %v192 = vunpack.c.l.b16 %v96
    %v193 = vunpack.c.h.b16 %v96
    %v194 = vunpack.c.l.b16 %v97
    %v195 = vunpack.c.h.b16 %v97
    %v196 = vunpack.c.l.b16 %v98
    %v197 = vunpack.c.h.b16 %v98
    %v198 = vunpack.c.l.b16 %v99
    %v199 = vunpack.c.h.b16 %v99
    %v200 = vunpack.c.l.b16 %v100
    %v201 = vunpack.c.h.b16 %v100
    %v202 = vunpack.c.l.b16 %v101
    %v203 = vunpack.c.h.b16 %v101
    %v204 = vunpack.c.l.b16 %v102
    %v205 = vunpack.c.h.b16 %v102
    %v206 = vunpack.c.l.b16 %v103
    %v207 = vunpack.c.h.b16 %v103
    %v208 = vunpack.c.l.b16 %v104
    %v209 = vunpack.c.h.b16 %v104
    %v210 = vunpack.c.l.b16 %v105
    %v211 = vunpack.c.h.b16 %v105
    %v212 = vunpack.c.l.b16 %v106
    %v213 = vunpack.c.h.b16 %v106
    %v214 = vunpack.c.l.b16 %v107
    %v215 = vunpack.c.h.b16 %v107
    %v216 = vpack.c.b16 %v154, %v152
    %v217 = vpack.c.b16 %v155, %v153
    %v218 = vpack.c.b16 %v158, %v156
    %v219 = vpack.c.b16 %v159, %v157
    %v220 = vpack.c.b16 %v162, %v160
    %v221 = vpack.c.b16 %v163, %v161
    %v222 = vpack.c.b16 %v166, %v164
    %v223 = vpack.c.b16 %v167, %v165
    %v224 = vpack.c.b16 %v170, %v168
    %v225 = vpack.c.b16 %v171, %v169
    %v226 = vpack.c.b16 %v174, %v172
    %v227 = vpack.c.b16 %v175, %v173
    %v228 = vpack.c.b16 %v178, %v176
    %v229 = vpack.c.b16 %v179, %v177
    %v230 = vpack.c.b16 %v182, %v180
    %v231 = vpack.c.b16 %v183, %v181
    %v232 = vpack.c.b16 %v186, %v184
    %v233 = vpack.c.b16 %v187, %v185
    %v234 = vpack.c.b16 %v190, %v188
    %v235 = vpack.c.b16 %v191, %v189
    %v236 = vpack.c.b16 %v194, %v192
    %v237 = vpack.c.b16 %v195, %v193
    %v238 = vpack.c.b16 %v198, %v196
    %v239 = vpack.c.b16 %v199, %v197
    %v240 = vpack.c.b16 %v202, %v200
    %v241 = vpack.c.b16 %v203, %v201
    %v242 = vpack.c.b16 %v206, %v204
    %v243 = vpack.c.b16 %v207, %v205
    %v244 = vpack.c.b16 %v210, %v208
    %v245 = vpack.c.b16 %v211, %v209
    %v246 = vpack.c.b16 %v214, %v212
    %v247 = vpack.c.b16 %v215, %v213
    %280 = vmatprep.subr.bf16.mxu0 %v217
    %281 = vmatpush1.bf16.msra.mxu0 %v216
    %282 = vmatprep.subr.bf16.mxu0 %v219
    %283 = vmatpush1.bf16.msra.mxu0 %v218
    %284 = vmatprep.subr.bf16.mxu0 %v221
    %285 = vmatpush1.bf16.msra.mxu0 %v220
    %286 = vmatprep.subr.bf16.mxu0 %v223
    %287 = vmatpush1.bf16.msra.mxu0 %v222
    %288 = vmatprep.subr.bf16.mxu0 %v225
    %289 = vmatpush1.bf16.msra.mxu0 %v224
    %290 = vmatprep.subr.bf16.mxu0 %v227
    %291 = vmatpush1.bf16.msra.mxu0 %v226
    %292 = vmatprep.subr.bf16.mxu0 %v229
    %293 = vmatpush1.bf16.msra.mxu0 %v228
    %294 = vmatprep.subr.bf16.mxu0 %v231
    %295 = vmatpush1.bf16.msra.mxu0 %v230
    %296 = vmatprep.subr.bf16.mxu0 %v233
    %297 = vmatpush1.bf16.msra.mxu0 %v232
    %298 = vmatprep.subr.bf16.mxu0 %v235
    %299 = vmatpush1.bf16.msra.mxu0 %v234
    %300 = vmatprep.subr.bf16.mxu0 %v237
    %301 = vmatpush1.bf16.msra.mxu0 %v236
    %302 = vmatprep.subr.bf16.mxu0 %v239
    %303 = vmatpush1.bf16.msra.mxu0 %v238
    %304 = vmatprep.subr.bf16.mxu0 %v241
    %305 = vmatpush1.bf16.msra.mxu0 %v240
    %306 = vmatprep.subr.bf16.mxu0 %v243
    %307 = vmatpush1.bf16.msra.mxu0 %v242
    %308 = vmatprep.subr.bf16.mxu0 %v245
    %309 = vmatpush1.bf16.msra.mxu0 %v244
    %310 = vmatprep.subr.bf16.mxu0 %v247
    %311 = vmatpush1.bf16.msra.mxu0 %v246
    %312 = vmatprep.mubr.bf16.mxu0 %v75
    %313 = vmatmul.mubr.bf16.gmra.mrb[0].mxu0 %v74
    %v314 = vpop.f32.mrb[0].mxu0
    %v315 = vadd.f32 %v113, %v314
    %v316 = vpop.f32.mrb[0].mxu0
    %v317 = vadd.f32 %v117, %v316
    %v318 = vpop.f32.mrb[0].mxu0
    %v319 = vadd.f32 %v113, %v318
    %v320 = vpop.f32.mrb[0].mxu0
    %v321 = vadd.f32 %v117, %v320
    %322 = vdwg.mxu0
    %v323 = vmax.f32 %v315, 0.0
    %v324 = vmax.f32 %v317, 0.0
    %v325 = vmax.f32 %v319, 0.0
    %v326 = vmax.f32 %v321, 0.0
    %v327 = vpack.c.bf16 %v325, %v323
    %v328 = vpack.c.bf16 %v326, %v324
    %v329 = vld [vmem:[#allocation8] sm:$0xff]
    %v330 = vld [vmem:[#allocation8 + $0x8] sm:$0xff]
    %v331 = vld [vmem:[#allocation8 + $0x10] sm:$0xff]
    %v332 = vld [vmem:[#allocation8 + $0x18] sm:$0xff]
    %v333 = vld [vmem:[#allocation8 + $0x20] sm:$0xff]
    %v334 = vld [vmem:[#allocation8 + $0x28] sm:$0xff]
    %v335 = vld [vmem:[#allocation8 + $0x30] sm:$0xff]
    %v336 = vld [vmem:[#allocation8 + $0x38] sm:$0xff]
    %v337 = vld [vmem:[#allocation8 + $0x40] sm:$0xff]
    %v338 = vld [vmem:[#allocation8 + $0x48] sm:$0xff]
    %v339 = vld [vmem:[#allocation8 + $0x50] sm:$0xff]
    %v340 = vld [vmem:[#allocation8 + $0x58] sm:$0xff]
    %v341 = vld [vmem:[#allocation8 + $0x60] sm:$0xff]
    %v342 = vld [vmem:[#allocation8 + $0x68] sm:$0xff]
    %v343 = vld [vmem:[#allocation8 + $0x70] sm:$0xff]
    %v344 = vld [vmem:[#allocation8 + $0x78] sm:$0xff]
    %v345 = vld [vmem:[#allocation8 + $0x80] sm:$0xff]
    %v346 = vld [vmem:[#allocation8 + $0x88] sm:$0xff]
    %v347 = vld [vmem:[#allocation8 + $0x90] sm:$0xff]
    %v348 = vld [vmem:[#allocation8 + $0x98] sm:$0xff]
    %v349 = vld [vmem:[#allocation8 + $0xa0] sm:$0xff]
    %v350 = vld [vmem:[#allocation8 + $0xa8] sm:$0xff]
    %v351 = vld [vmem:[#allocation8 + $0xb0] sm:$0xff]
    %v352 = vld [vmem:[#allocation8 + $0xb8] sm:$0xff]
    %v353 = vld [vmem:[#allocation8 + $0xc0] sm:$0xff]
    %v354 = vld [vmem:[#allocation8 + $0xc8] sm:$0xff]
    %v355 = vld [vmem:[#allocation8 + $0xd0] sm:$0xff]
    %v356 = vld [vmem:[#allocation8 + $0xd8] sm:$0xff]
    %v357 = vld [vmem:[#allocation8 + $0xe0] sm:$0xff]
    %v358 = vld [vmem:[#allocation8 + $0xe8] sm:$0xff]
    %v359 = vld [vmem:[#allocation8 + $0xf0] sm:$0xff]
    %v360 = vld [vmem:[#allocation8 + $0xf8] sm:$0xff]
    %v361 = vld [vmem:[%s4] sm:$0x3]
    %v363 = vlaneseq
    %v364 = vshrl.u32 %v363, 7
    %v365 = vsub.s32 0, %v364
    %v366 = vrot.slane %v361, %v365
    %v367 = vlaneseq
    %v368 = vshrl.u32 %v367, 7
    %v369 = vsub.s32 1, %v368
    %v370 = vrot.slane %v361, %v369
    %v405 = vunpack.c.l.b16 %v329
    %v406 = vunpack.c.h.b16 %v329
    %v407 = vunpack.c.l.b16 %v330
    %v408 = vunpack.c.h.b16 %v330
    %v409 = vunpack.c.l.b16 %v331
    %v410 = vunpack.c.h.b16 %v331
    %v411 = vunpack.c.l.b16 %v332
    %v412 = vunpack.c.h.b16 %v332
    %v413 = vunpack.c.l.b16 %v333
    %v414 = vunpack.c.h.b16 %v333
    %v415 = vunpack.c.l.b16 %v334
    %v416 = vunpack.c.h.b16 %v334
    %v417 = vunpack.c.l.b16 %v335
    %v418 = vunpack.c.h.b16 %v335
    %v419 = vunpack.c.l.b16 %v336
    %v420 = vunpack.c.h.b16 %v336
    %v421 = vunpack.c.l.b16 %v337
    %v422 = vunpack.c.h.b16 %v337
    %v423 = vunpack.c.l.b16 %v338
    %v424 = vunpack.c.h.b16 %v338
    %v425 = vunpack.c.l.b16 %v339
    %v426 = vunpack.c.h.b16 %v339
    %v427 = vunpack.c.l.b16 %v340
    %v428 = vunpack.c.h.b16 %v340
    %v429 = vunpack.c.l.b16 %v341
    %v430 = vunpack.c.h.b16 %v341
    %v431 = vunpack.c.l.b16 %v342
    %v432 = vunpack.c.h.b16 %v342
    %v433 = vunpack.c.l.b16 %v343
    %v434 = vunpack.c.h.b16 %v343
    %v435 = vunpack.c.l.b16 %v344
    %v436 = vunpack.c.h.b16 %v344
    %v437 = vunpack.c.l.b16 %v345
    %v438 = vunpack.c.h.b16 %v345
    %v439 = vunpack.c.l.b16 %v346
    %v440 = vunpack.c.h.b16 %v346
    %v441 = vunpack.c.l.b16 %v347
    %v442 = vunpack.c.h.b16 %v347
    %v443 = vunpack.c.l.b16 %v348
    %v444 = vunpack.c.h.b16 %v348
    %v445 = vunpack.c.l.b16 %v349
    %v446 = vunpack.c.h.b16 %v349
    %v447 = vunpack.c.l.b16 %v350
    %v448 = vunpack.c.h.b16 %v350
    %v449 = vunpack.c.l.b16 %v351
    %v450 = vunpack.c.h.b16 %v351
    %v451 = vunpack.c.l.b16 %v352
    %v452 = vunpack.c.h.b16 %v352
    %v453 = vunpack.c.l.b16 %v353
    %v454 = vunpack.c.h.b16 %v353
    %v455 = vunpack.c.l.b16 %v354
    %v456 = vunpack.c.h.b16 %v354
    %v457 = vunpack.c.l.b16 %v355
    %v458 = vunpack.c.h.b16 %v355
    %v459 = vunpack.c.l.b16 %v356
    %v460 = vunpack.c.h.b16 %v356
    %v461 = vunpack.c.l.b16 %v357
    %v462 = vunpack.c.h.b16 %v357
    %v463 = vunpack.c.l.b16 %v358
    %v464 = vunpack.c.h.b16 %v358
    %v465 = vunpack.c.l.b16 %v359
    %v466 = vunpack.c.h.b16 %v359
    %v467 = vunpack.c.l.b16 %v360
    %v468 = vunpack.c.h.b16 %v360
    %v469 = vpack.c.b16 %v407, %v405
    %v470 = vpack.c.b16 %v408, %v406
    %v471 = vpack.c.b16 %v411, %v409
    %v472 = vpack.c.b16 %v412, %v410
    %v473 = vpack.c.b16 %v415, %v413
    %v474 = vpack.c.b16 %v416, %v414
    %v475 = vpack.c.b16 %v419, %v417
    %v476 = vpack.c.b16 %v420, %v418
    %v477 = vpack.c.b16 %v423, %v421
    %v478 = vpack.c.b16 %v424, %v422
    %v479 = vpack.c.b16 %v427, %v425
    %v480 = vpack.c.b16 %v428, %v426
    %v481 = vpack.c.b16 %v431, %v429
    %v482 = vpack.c.b16 %v432, %v430
    %v483 = vpack.c.b16 %v435, %v433
    %v484 = vpack.c.b16 %v436, %v434
    %v485 = vpack.c.b16 %v439, %v437
    %v486 = vpack.c.b16 %v440, %v438
    %v487 = vpack.c.b16 %v443, %v441
    %v488 = vpack.c.b16 %v444, %v442
    %v489 = vpack.c.b16 %v447, %v445
    %v490 = vpack.c.b16 %v448, %v446
    %v491 = vpack.c.b16 %v451, %v449
    %v492 = vpack.c.b16 %v452, %v450
    %v493 = vpack.c.b16 %v455, %v453
    %v494 = vpack.c.b16 %v456, %v454
    %v495 = vpack.c.b16 %v459, %v457
    %v496 = vpack.c.b16 %v460, %v458
    %v497 = vpack.c.b16 %v463, %v461
    %v498 = vpack.c.b16 %v464, %v462
    %v499 = vpack.c.b16 %v467, %v465
    %v500 = vpack.c.b16 %v468, %v466
    %533 = vmatprep.subr.bf16.mxu0 %v470
    %534 = vmatpush1.bf16.msra.mxu0 %v469
    %535 = vmatprep.subr.bf16.mxu0 %v472
    %536 = vmatpush1.bf16.msra.mxu0 %v471
    %537 = vmatprep.subr.bf16.mxu0 %v474
    %538 = vmatpush1.bf16.msra.mxu0 %v473
    %539 = vmatprep.subr.bf16.mxu0 %v476
    %540 = vmatpush1.bf16.msra.mxu0 %v475
    %541 = vmatprep.subr.bf16.mxu0 %v478
    %542 = vmatpush1.bf16.msra.mxu0 %v477
    %543 = vmatprep.subr.bf16.mxu0 %v480
    %544 = vmatpush1.bf16.msra.mxu0 %v479
    %545 = vmatprep.subr.bf16.mxu0 %v482
    %546 = vmatpush1.bf16.msra.mxu0 %v481
    %547 = vmatprep.subr.bf16.mxu0 %v484
    %548 = vmatpush1.bf16.msra.mxu0 %v483
    %549 = vmatprep.subr.bf16.mxu0 %v486
    %550 = vmatpush1.bf16.msra.mxu0 %v485
    %551 = vmatprep.subr.bf16.mxu0 %v488
    %552 = vmatpush1.bf16.msra.mxu0 %v487
    %553 = vmatprep.subr.bf16.mxu0 %v490
    %554 = vmatpush1.bf16.msra.mxu0 %v489
    %555 = vmatprep.subr.bf16.mxu0 %v492
    %556 = vmatpush1.bf16.msra.mxu0 %v491
    %557 = vmatprep.subr.bf16.mxu0 %v494
    %558 = vmatpush1.bf16.msra.mxu0 %v493
    %559 = vmatprep.subr.bf16.mxu0 %v496
    %560 = vmatpush1.bf16.msra.mxu0 %v495
    %561 = vmatprep.subr.bf16.mxu0 %v498
    %562 = vmatpush1.bf16.msra.mxu0 %v497
    %563 = vmatprep.subr.bf16.mxu0 %v500
    %564 = vmatpush1.bf16.msra.mxu0 %v499
    %565 = vmatprep.mubr.bf16.mxu0 %v328
    %566 = vmatmul.mubr.bf16.gmra.mrb[0].mxu0 %v327
    %v567 = vpop.f32.mrb[0].mxu0
    %v568 = vadd.f32 %v366, %v567
    %v569 = vpop.f32.mrb[0].mxu0
    %v570 = vadd.f32 %v370, %v569
    %v571 = vpop.f32.mrb[0].mxu0
    %v572 = vadd.f32 %v366, %v571
    %v573 = vpop.f32.mrb[0].mxu0
    %v574 = vadd.f32 %v370, %v573
    %575 = vdwg.mxu0
    %576 = vst [vmem:[#allocation9] sm:$0xff] %v568
    %577 = vst.msk [vmem:[#allocation9 + $0x8] sm:$0xff] %vm70, %v570
    %578 = vst [vmem:[#allocation9 + $0x10] sm:$0xff] %v572
    %579 = vst.msk [vmem:[#allocation9 + $0x18] sm:$0xff] %vm70, %v574
    // Predicated region
    $region34: #{ffn_forward.1} parent=1 // pred_check
      _
    $region35: #{ffn_forward.1} parent=1 // pred_check_branch
      %581 = sbr.rel (0) target = $region37
    $region36: #{ffn_forward.1} parent=1 // pred_region
      %s583 = ssub.s32 512, 512
      %584 = vsyncadd [#allocation5], %s583
      %s585 = sshll.u32 [#allocation9], 4
      %s586 = int_to_ptr.vmem [resolvable:$true] %s585
      %591 = dma.vmem_to_hbm [thread:$0]  %s586, 512, %s5, [#allocation5], 256, 256, 16
    $region37: #{ffn_forward.1} parent=1 // pred_fallthru
      _
    // Predicated region
    $region38: #{ffn_forward.1} parent=1 // pred_check
      _
    $region39: #{ffn_forward.1} parent=1 // pred_check_branch
      %593 = sbr.rel (0) target = $region41
    $region40: #{ffn_forward.1} parent=1 // pred_region
      %594 = dma.done [#allocation5], 512
    $region41: #{ffn_forward.1} parent=1 // pred_fallthru
      _
    %595 = vsyncpa [#allocation4], 1
    %596 = vsyncpa [#allocation7], 1
    %597 = vsyncpa [#allocation5], 1

</llo_original>
